<compile_context>
chip_gen: v7x
topology: tpu7x:2x2x1
jax: 0.10.0
libtpu: 0.0.40
codegen_flags: <defaults>
</compile_context>

<pallas_src>
import functools

import jax
import jax.numpy as jnp
from jax import lax
from jax.experimental import pallas as pl
from jax.experimental.pallas import tpu as pltpu

_SUB = 8  # f32 sublanes per vreg row


def _mlp_kernel(xT_ref, w1_ref, b1_ref, w2_ref, b2_ref, oT_ref):
    # xT_ref: (IN, GT, 128) f32 VMEM       oT_ref: (OUT, GT, 128) f32 VMEM
    # w1_ref: (HID, IN)  b1_ref: (HID,)  w2_ref: (OUT, HID)  b2_ref: (OUT,)  (SMEM)
    in_f, gt, _ = xT_ref.shape
    hid = w1_ref.shape[0]
    out_f = w2_ref.shape[0]

    # Hoist loop-invariant scalar reads of weights/biases out of the vreg-row loop.
    w1 = [[w1_ref[j, k] for k in range(in_f)] for j in range(hid)]
    b1 = [b1_ref[j] for j in range(hid)]
    w2 = [[w2_ref[i, j] for j in range(hid)] for i in range(out_f)]
    b2 = [b2_ref[i] for i in range(out_f)]

    def compute_chunk(start, size):
        sl = pl.ds(start, size)
        x = [xT_ref[k, sl, :] for k in range(in_f)]            # in_f vreg rows
        h = []
        for j in range(hid):
            acc = jnp.full((size, 128), b1[j], dtype=jnp.float32)
            for k in range(in_f):
                acc = acc + w1[j][k] * x[k]                    # scalar-splat FMA (VPU)
            h.append(jnp.maximum(acc, 0.0))                    # ReLU
        for i in range(out_f):
            acc = jnp.full((size, 128), b2[i], dtype=jnp.float32)
            for j in range(hid):
                acc = acc + w2[i][j] * h[j]
            oT_ref[i, sl, :] = acc.astype(oT_ref.dtype)        # lane-dense store

    n_full = gt // _SUB
    if n_full > 0:
        def body(s, carry):
            compute_chunk(pl.multiple_of(s * _SUB, _SUB), _SUB)
            return carry
        lax.fori_loop(0, n_full, body, 0)
    rem = gt - n_full * _SUB
    if rem > 0:                         # only for tiny single-block cases (gt < 8 etc.)
        compute_chunk(n_full * _SUB, rem)


def _choose_group_tile(g, tile_n):
    """Number of 128-lane groups per block (batch tile = gt*128, multiple of 128)."""
    gt_cap = max(1, tile_n // 128)
    gt_cap = min(gt_cap, 1024)          # keep double-buffered VMEM footprint modest
    if g >= 16:                         # enough work: keep >=2 grid steps (v7x megacore)
        gt_cap = min(gt_cap, g // 2)
    if gt_cap >= g or g <= _SUB:
        return g                        # single block == full extent (always legal)
    return max(_SUB, (gt_cap // _SUB) * _SUB)   # multiple of 8 sublane-groups


@functools.partial(jax.jit, static_argnames=("tile_n",))
def simple_model_forward(x, w1, b1, w2, b2, *, tile_n=65536):
    """x: (N, 10); w1: (5, 10); b1: (5,); w2: (2, 5); b2: (2,) -> (N, 2).

    Weights/biases are in PyTorch nn.Linear layout (out_features, in_features).
    """
    n, in_f = x.shape
    out_f = w2.shape[0]

    # Lane-dense layout: batch on the 128-lane axis, packed 8 rows per sublane group.
    g = pl.cdiv(n, 128)                 # number of 128-lane groups
    n_pad = g * 128
    xT = x.T
    if n_pad != n:
        xT = jnp.pad(xT, ((0, 0), (0, n_pad - n)))     # pad only to a 128 multiple
    xT3 = xT.reshape(in_f, g, 128)      # free row-major reshape

    gt = _choose_group_tile(g, tile_n)
    grid = (pl.cdiv(g, gt),)

    # Double-buffered x/y blocks + headroom; also overrides v5e's 16 MiB default.
    vmem_bytes = 2 * 4 * (in_f + out_f) * gt * 128 + (4 << 20)
    vmem_bytes = int(min(max(vmem_bytes, 32 << 20), 48 << 20))

    yT3 = pl.pallas_call(
        _mlp_kernel,
        out_shape=jax.ShapeDtypeStruct((out_f, g, 128), x.dtype),
        grid=grid,
        in_specs=[
            pl.BlockSpec((in_f, gt, 128), lambda i: (0, i, 0)),      # x tile (VMEM)
            pl.BlockSpec(memory_space=pltpu.MemorySpace.SMEM),       # w1 scalars
            pl.BlockSpec(memory_space=pltpu.MemorySpace.SMEM),       # b1
            pl.BlockSpec(memory_space=pltpu.MemorySpace.SMEM),       # w2
            pl.BlockSpec(memory_space=pltpu.MemorySpace.SMEM),       # b2
        ],
        out_specs=pl.BlockSpec((out_f, gt, 128), lambda i: (0, i, 0)),  # lane-dense
        compiler_params=pltpu.CompilerParams(
            dimension_semantics=("parallel",),
            vmem_limit_bytes=vmem_bytes,
        ),
    )(xT3, w1, b1, w2, b2)

    # Back to the PyTorch-facing (N, 2) layout; drop padding.
    return yT3.reshape(out_f, n_pad)[:, :n].T


def _ref_forward(x, w1, b1, w2, b2):
    return jnp.maximum(x @ w1.T + b1, 0.0) @ w2.T + b2


def init_params(key):
    """Deterministic init mirroring nn.Linear's U(-1/sqrt(fan_in), 1/sqrt(fan_in))."""
    k1, k2, k3, k4 = jax.random.split(key, 4)
    bound1 = 1.0 / jnp.sqrt(10.0)
    bound2 = 1.0 / jnp.sqrt(5.0)
    w1 = jax.random.uniform(k1, (5, 10), jnp.float32, -bound1, bound1)
    b1 = jax.random.uniform(k2, (5,), jnp.float32, -bound1, bound1)
    w2 = jax.random.uniform(k3, (2, 5), jnp.float32, -bound2, bound2)
    b2 = jax.random.uniform(k4, (2,), jnp.float32, -bound2, bound2)
    return w1, b1, w2, b2


if __name__ == "__main__":
    key = jax.random.PRNGKey(0)
    pkey, xkey1, xkey2 = jax.random.split(key, 3)
    w1, b1, w2, b2 = init_params(pkey)

    # Small batch (single partial vreg row), as in the original example.
    x_small = jax.random.normal(xkey1, (8, 10), jnp.float32)
    out_small = simple_model_forward(x_small, w1, b1, w2, b2)
    jax.block_until_ready(out_small)
    ref_small = _ref_forward(x_small, w1, b1, w2, b2)
    assert out_small.shape == (8, 2)
    assert jnp.allclose(out_small, ref_small, atol=1e-5), "mismatch vs reference (small)"

    # Non-multiple-of-128 batch with a small tile: exercises the multi-step grid,
    # the in-kernel vreg-row loop, and the Pallas-padded trailing partial block.
    x_big = jax.random.normal(xkey2, (2050, 10), jnp.float32)
    out_big = simple_model_forward(x_big, w1, b1, w2, b2, tile_n=1024)
    jax.block_until_ready(out_big)
    ref_big = _ref_forward(x_big, w1, b1, w2, b2)
    assert out_big.shape == (2050, 2)
    assert jnp.allclose(out_big, ref_big, atol=1e-5), "mismatch vs reference (big)"

    print("KERNEL_OK")
</pallas_src>

<mosaic_0001>
module attributes {stable_mosaic.version = 11 : i64} {
  func.func @_mlp_kernel(%arg0: i32, %arg1: memref<10x1x128xf32, #tpu.memory_space<vmem>>, %arg2: memref<5x10xf32, #tpu.memory_space<smem>>, %arg3: memref<5xf32, #tpu.memory_space<smem>>, %arg4: memref<2x5xf32, #tpu.memory_space<smem>>, %arg5: memref<2xf32, #tpu.memory_space<smem>>, %arg6: memref<2x1x128xf32, #tpu.memory_space<vmem>>) attributes {dimension_semantics = [#tpu.dimension_semantics<parallel>], iteration_bounds = array<i64: 1>, scalar_prefetch = 0 : i64, scratch_operands = 0 : i64, tpu.core_type = #tpu.core_type<tc>, window_params = [{transform_indices = @transform_0, window_bounds = array<i64: 10, 1, 128>}, {transform_indices = @transform_1, window_bounds = array<i64: 5, 10>}, {transform_indices = @transform_2, window_bounds = array<i64: 5>}, {transform_indices = @transform_3, window_bounds = array<i64: 2, 5>}, {transform_indices = @transform_4, window_bounds = array<i64: 2>}, {transform_indices = @transform_5, window_bounds = array<i64: 2, 1, 128>}]} {
    %c0 = arith.constant 0 : index
    %c0_0 = arith.constant 0 : index
    %0 = memref.load %arg2[%c0, %c0_0] : memref<5x10xf32, #tpu.memory_space<smem>>
    %c0_1 = arith.constant 0 : index
    %c1 = arith.constant 1 : index
    %1 = memref.load %arg2[%c0_1, %c1] : memref<5x10xf32, #tpu.memory_space<smem>>
    %c0_2 = arith.constant 0 : index
    %c2 = arith.constant 2 : index
    %2 = memref.load %arg2[%c0_2, %c2] : memref<5x10xf32, #tpu.memory_space<smem>>
    %c0_3 = arith.constant 0 : index
    %c3 = arith.constant 3 : index
    %3 = memref.load %arg2[%c0_3, %c3] : memref<5x10xf32, #tpu.memory_space<smem>>
    %c0_4 = arith.constant 0 : index
    %c4 = arith.constant 4 : index
    %4 = memref.load %arg2[%c0_4, %c4] : memref<5x10xf32, #tpu.memory_space<smem>>
    %c0_5 = arith.constant 0 : index
    %c5 = arith.constant 5 : index
    %5 = memref.load %arg2[%c0_5, %c5] : memref<5x10xf32, #tpu.memory_space<smem>>
    %c0_6 = arith.constant 0 : index
    %c6 = arith.constant 6 : index
    %6 = memref.load %arg2[%c0_6, %c6] : memref<5x10xf32, #tpu.memory_space<smem>>
    %c0_7 = arith.constant 0 : index
    %c7 = arith.constant 7 : index
    %7 = memref.load %arg2[%c0_7, %c7] : memref<5x10xf32, #tpu.memory_space<smem>>
    %c0_8 = arith.constant 0 : index
    %c8 = arith.constant 8 : index
    %8 = memref.load %arg2[%c0_8, %c8] : memref<5x10xf32, #tpu.memory_space<smem>>
    %c0_9 = arith.constant 0 : index
    %c9 = arith.constant 9 : index
    %9 = memref.load %arg2[%c0_9, %c9] : memref<5x10xf32, #tpu.memory_space<smem>>
    %c1_10 = arith.constant 1 : index
    %c0_11 = arith.constant 0 : index
    %10 = memref.load %arg2[%c1_10, %c0_11] : memref<5x10xf32, #tpu.memory_space<smem>>
    %c1_12 = arith.constant 1 : index
    %c1_13 = arith.constant 1 : index
    %11 = memref.load %arg2[%c1_12, %c1_13] : memref<5x10xf32, #tpu.memory_space<smem>>
    %c1_14 = arith.constant 1 : index
    %c2_15 = arith.constant 2 : index
    %12 = memref.load %arg2[%c1_14, %c2_15] : memref<5x10xf32, #tpu.memory_space<smem>>
    %c1_16 = arith.constant 1 : index
    %c3_17 = arith.constant 3 : index
    %13 = memref.load %arg2[%c1_16, %c3_17] : memref<5x10xf32, #tpu.memory_space<smem>>
    %c1_18 = arith.constant 1 : index
    %c4_19 = arith.constant 4 : index
    %14 = memref.load %arg2[%c1_18, %c4_19] : memref<5x10xf32, #tpu.memory_space<smem>>
    %c1_20 = arith.constant 1 : index
    %c5_21 = arith.constant 5 : index
    %15 = memref.load %arg2[%c1_20, %c5_21] : memref<5x10xf32, #tpu.memory_space<smem>>
    %c1_22 = arith.constant 1 : index
    %c6_23 = arith.constant 6 : index
    %16 = memref.load %arg2[%c1_22, %c6_23] : memref<5x10xf32, #tpu.memory_space<smem>>
    %c1_24 = arith.constant 1 : index
    %c7_25 = arith.constant 7 : index
    %17 = memref.load %arg2[%c1_24, %c7_25] : memref<5x10xf32, #tpu.memory_space<smem>>
    %c1_26 = arith.constant 1 : index
    %c8_27 = arith.constant 8 : index
    %18 = memref.load %arg2[%c1_26, %c8_27] : memref<5x10xf32, #tpu.memory_space<smem>>
    %c1_28 = arith.constant 1 : index
    %c9_29 = arith.constant 9 : index
    %19 = memref.load %arg2[%c1_28, %c9_29] : memref<5x10xf32, #tpu.memory_space<smem>>
    %c2_30 = arith.constant 2 : index
    %c0_31 = arith.constant 0 : index
    %20 = memref.load %arg2[%c2_30, %c0_31] : memref<5x10xf32, #tpu.memory_space<smem>>
    %c2_32 = arith.constant 2 : index
    %c1_33 = arith.constant 1 : index
    %21 = memref.load %arg2[%c2_32, %c1_33] : memref<5x10xf32, #tpu.memory_space<smem>>
    %c2_34 = arith.constant 2 : index
    %c2_35 = arith.constant 2 : index
    %22 = memref.load %arg2[%c2_34, %c2_35] : memref<5x10xf32, #tpu.memory_space<smem>>
    %c2_36 = arith.constant 2 : index
    %c3_37 = arith.constant 3 : index
    %23 = memref.load %arg2[%c2_36, %c3_37] : memref<5x10xf32, #tpu.memory_space<smem>>
    %c2_38 = arith.constant 2 : index
    %c4_39 = arith.constant 4 : index
    %24 = memref.load %arg2[%c2_38, %c4_39] : memref<5x10xf32, #tpu.memory_space<smem>>
    %c2_40 = arith.constant 2 : index
    %c5_41 = arith.constant 5 : index
    %25 = memref.load %arg2[%c2_40, %c5_41] : memref<5x10xf32, #tpu.memory_space<smem>>
    %c2_42 = arith.constant 2 : index
    %c6_43 = arith.constant 6 : index
    %26 = memref.load %arg2[%c2_42, %c6_43] : memref<5x10xf32, #tpu.memory_space<smem>>
    %c2_44 = arith.constant 2 : index
    %c7_45 = arith.constant 7 : index
    %27 = memref.load %arg2[%c2_44, %c7_45] : memref<5x10xf32, #tpu.memory_space<smem>>
    %c2_46 = arith.constant 2 : index
    %c8_47 = arith.constant 8 : index
    %28 = memref.load %arg2[%c2_46, %c8_47] : memref<5x10xf32, #tpu.memory_space<smem>>
    %c2_48 = arith.constant 2 : index
    %c9_49 = arith.constant 9 : index
    %29 = memref.load %arg2[%c2_48, %c9_49] : memref<5x10xf32, #tpu.memory_space<smem>>
    %c3_50 = arith.constant 3 : index
    %c0_51 = arith.constant 0 : index
    %30 = memref.load %arg2[%c3_50, %c0_51] : memref<5x10xf32, #tpu.memory_space<smem>>
    %c3_52 = arith.constant 3 : index
    %c1_53 = arith.constant 1 : index
    %31 = memref.load %arg2[%c3_52, %c1_53] : memref<5x10xf32, #tpu.memory_space<smem>>
    %c3_54 = arith.constant 3 : index
    %c2_55 = arith.constant 2 : index
    %32 = memref.load %arg2[%c3_54, %c2_55] : memref<5x10xf32, #tpu.memory_space<smem>>
    %c3_56 = arith.constant 3 : index
    %c3_57 = arith.constant 3 : index
    %33 = memref.load %arg2[%c3_56, %c3_57] : memref<5x10xf32, #tpu.memory_space<smem>>
    %c3_58 = arith.constant 3 : index
    %c4_59 = arith.constant 4 : index
    %34 = memref.load %arg2[%c3_58, %c4_59] : memref<5x10xf32, #tpu.memory_space<smem>>
    %c3_60 = arith.constant 3 : index
    %c5_61 = arith.constant 5 : index
    %35 = memref.load %arg2[%c3_60, %c5_61] : memref<5x10xf32, #tpu.memory_space<smem>>
    %c3_62 = arith.constant 3 : index
    %c6_63 = arith.constant 6 : index
    %36 = memref.load %arg2[%c3_62, %c6_63] : memref<5x10xf32, #tpu.memory_space<smem>>
    %c3_64 = arith.constant 3 : index
    %c7_65 = arith.constant 7 : index
    %37 = memref.load %arg2[%c3_64, %c7_65] : memref<5x10xf32, #tpu.memory_space<smem>>
    %c3_66 = arith.constant 3 : index
    %c8_67 = arith.constant 8 : index
    %38 = memref.load %arg2[%c3_66, %c8_67] : memref<5x10xf32, #tpu.memory_space<smem>>
    %c3_68 = arith.constant 3 : index
    %c9_69 = arith.constant 9 : index
    %39 = memref.load %arg2[%c3_68, %c9_69] : memref<5x10xf32, #tpu.memory_space<smem>>
    %c4_70 = arith.constant 4 : index
    %c0_71 = arith.constant 0 : index
    %40 = memref.load %arg2[%c4_70, %c0_71] : memref<5x10xf32, #tpu.memory_space<smem>>
    %c4_72 = arith.constant 4 : index
    %c1_73 = arith.constant 1 : index
    %41 = memref.load %arg2[%c4_72, %c1_73] : memref<5x10xf32, #tpu.memory_space<smem>>
    %c4_74 = arith.constant 4 : index
    %c2_75 = arith.constant 2 : index
    %42 = memref.load %arg2[%c4_74, %c2_75] : memref<5x10xf32, #tpu.memory_space<smem>>
    %c4_76 = arith.constant 4 : index
    %c3_77 = arith.constant 3 : index
    %43 = memref.load %arg2[%c4_76, %c3_77] : memref<5x10xf32, #tpu.memory_space<smem>>
    %c4_78 = arith.constant 4 : index
    %c4_79 = arith.constant 4 : index
    %44 = memref.load %arg2[%c4_78, %c4_79] : memref<5x10xf32, #tpu.memory_space<smem>>
    %c4_80 = arith.constant 4 : index
    %c5_81 = arith.constant 5 : index
    %45 = memref.load %arg2[%c4_80, %c5_81] : memref<5x10xf32, #tpu.memory_space<smem>>
    %c4_82 = arith.constant 4 : index
    %c6_83 = arith.constant 6 : index
    %46 = memref.load %arg2[%c4_82, %c6_83] : memref<5x10xf32, #tpu.memory_space<smem>>
    %c4_84 = arith.constant 4 : index
    %c7_85 = arith.constant 7 : index
    %47 = memref.load %arg2[%c4_84, %c7_85] : memref<5x10xf32, #tpu.memory_space<smem>>
    %c4_86 = arith.constant 4 : index
    %c8_87 = arith.constant 8 : index
    %48 = memref.load %arg2[%c4_86, %c8_87] : memref<5x10xf32, #tpu.memory_space<smem>>
    %c4_88 = arith.constant 4 : index
    %c9_89 = arith.constant 9 : index
    %49 = memref.load %arg2[%c4_88, %c9_89] : memref<5x10xf32, #tpu.memory_space<smem>>
    %c0_90 = arith.constant 0 : index
    %50 = memref.load %arg3[%c0_90] : memref<5xf32, #tpu.memory_space<smem>>
    %c1_91 = arith.constant 1 : index
    %51 = memref.load %arg3[%c1_91] : memref<5xf32, #tpu.memory_space<smem>>
    %c2_92 = arith.constant 2 : index
    %52 = memref.load %arg3[%c2_92] : memref<5xf32, #tpu.memory_space<smem>>
    %c3_93 = arith.constant 3 : index
    %53 = memref.load %arg3[%c3_93] : memref<5xf32, #tpu.memory_space<smem>>
    %c4_94 = arith.constant 4 : index
    %54 = memref.load %arg3[%c4_94] : memref<5xf32, #tpu.memory_space<smem>>
    %c0_95 = arith.constant 0 : index
    %c0_96 = arith.constant 0 : index
    %55 = memref.load %arg4[%c0_95, %c0_96] : memref<2x5xf32, #tpu.memory_space<smem>>
    %c0_97 = arith.constant 0 : index
    %c1_98 = arith.constant 1 : index
    %56 = memref.load %arg4[%c0_97, %c1_98] : memref<2x5xf32, #tpu.memory_space<smem>>
    %c0_99 = arith.constant 0 : index
    %c2_100 = arith.constant 2 : index
    %57 = memref.load %arg4[%c0_99, %c2_100] : memref<2x5xf32, #tpu.memory_space<smem>>
    %c0_101 = arith.constant 0 : index
    %c3_102 = arith.constant 3 : index
    %58 = memref.load %arg4[%c0_101, %c3_102] : memref<2x5xf32, #tpu.memory_space<smem>>
    %c0_103 = arith.constant 0 : index
    %c4_104 = arith.constant 4 : index
    %59 = memref.load %arg4[%c0_103, %c4_104] : memref<2x5xf32, #tpu.memory_space<smem>>
    %c1_105 = arith.constant 1 : index
    %c0_106 = arith.constant 0 : index
    %60 = memref.load %arg4[%c1_105, %c0_106] : memref<2x5xf32, #tpu.memory_space<smem>>
    %c1_107 = arith.constant 1 : index
    %c1_108 = arith.constant 1 : index
    %61 = memref.load %arg4[%c1_107, %c1_108] : memref<2x5xf32, #tpu.memory_space<smem>>
    %c1_109 = arith.constant 1 : index
    %c2_110 = arith.constant 2 : index
    %62 = memref.load %arg4[%c1_109, %c2_110] : memref<2x5xf32, #tpu.memory_space<smem>>
    %c1_111 = arith.constant 1 : index
    %c3_112 = arith.constant 3 : index
    %63 = memref.load %arg4[%c1_111, %c3_112] : memref<2x5xf32, #tpu.memory_space<smem>>
    %c1_113 = arith.constant 1 : index
    %c4_114 = arith.constant 4 : index
    %64 = memref.load %arg4[%c1_113, %c4_114] : memref<2x5xf32, #tpu.memory_space<smem>>
    %c0_115 = arith.constant 0 : index
    %65 = memref.load %arg5[%c0_115] : memref<2xf32, #tpu.memory_space<smem>>
    %c1_116 = arith.constant 1 : index
    %66 = memref.load %arg5[%c1_116] : memref<2xf32, #tpu.memory_space<smem>>
    %c0_117 = arith.constant 0 : index
    %c0_118 = arith.constant 0 : index
    %c0_119 = arith.constant 0 : index
    %67 = vector.load %arg1[%c0_117, %c0_118, %c0_119] : memref<10x1x128xf32, #tpu.memory_space<vmem>>, vector<1x1x128xf32>
    %68 = vector.shape_cast %67 : vector<1x1x128xf32> to vector<1x128xf32>
    %c1_120 = arith.constant 1 : index
    %c0_121 = arith.constant 0 : index
    %c0_122 = arith.constant 0 : index
    %69 = vector.load %arg1[%c1_120, %c0_121, %c0_122] : memref<10x1x128xf32, #tpu.memory_space<vmem>>, vector<1x1x128xf32>
    %70 = vector.shape_cast %69 : vector<1x1x128xf32> to vector<1x128xf32>
    %c2_123 = arith.constant 2 : index
    %c0_124 = arith.constant 0 : index
    %c0_125 = arith.constant 0 : index
    %71 = vector.load %arg1[%c2_123, %c0_124, %c0_125] : memref<10x1x128xf32, #tpu.memory_space<vmem>>, vector<1x1x128xf32>
    %72 = vector.shape_cast %71 : vector<1x1x128xf32> to vector<1x128xf32>
    %c3_126 = arith.constant 3 : index
    %c0_127 = arith.constant 0 : index
    %c0_128 = arith.constant 0 : index
    %73 = vector.load %arg1[%c3_126, %c0_127, %c0_128] : memref<10x1x128xf32, #tpu.memory_space<vmem>>, vector<1x1x128xf32>
    %74 = vector.shape_cast %73 : vector<1x1x128xf32> to vector<1x128xf32>
    %c4_129 = arith.constant 4 : index
    %c0_130 = arith.constant 0 : index
    %c0_131 = arith.constant 0 : index
    %75 = vector.load %arg1[%c4_129, %c0_130, %c0_131] : memref<10x1x128xf32, #tpu.memory_space<vmem>>, vector<1x1x128xf32>
    %76 = vector.shape_cast %75 : vector<1x1x128xf32> to vector<1x128xf32>
    %c5_132 = arith.constant 5 : index
    %c0_133 = arith.constant 0 : index
    %c0_134 = arith.constant 0 : index
    %77 = vector.load %arg1[%c5_132, %c0_133, %c0_134] : memref<10x1x128xf32, #tpu.memory_space<vmem>>, vector<1x1x128xf32>
    %78 = vector.shape_cast %77 : vector<1x1x128xf32> to vector<1x128xf32>
    %c6_135 = arith.constant 6 : index
    %c0_136 = arith.constant 0 : index
    %c0_137 = arith.constant 0 : index
    %79 = vector.load %arg1[%c6_135, %c0_136, %c0_137] : memref<10x1x128xf32, #tpu.memory_space<vmem>>, vector<1x1x128xf32>
    %80 = vector.shape_cast %79 : vector<1x1x128xf32> to vector<1x128xf32>
    %c7_138 = arith.constant 7 : index
    %c0_139 = arith.constant 0 : index
    %c0_140 = arith.constant 0 : index
    %81 = vector.load %arg1[%c7_138, %c0_139, %c0_140] : memref<10x1x128xf32, #tpu.memory_space<vmem>>, vector<1x1x128xf32>
    %82 = vector.shape_cast %81 : vector<1x1x128xf32> to vector<1x128xf32>
    %c8_141 = arith.constant 8 : index
    %c0_142 = arith.constant 0 : index
    %c0_143 = arith.constant 0 : index
    %83 = vector.load %arg1[%c8_141, %c0_142, %c0_143] : memref<10x1x128xf32, #tpu.memory_space<vmem>>, vector<1x1x128xf32>
    %84 = vector.shape_cast %83 : vector<1x1x128xf32> to vector<1x128xf32>
    %c9_144 = arith.constant 9 : index
    %c0_145 = arith.constant 0 : index
    %c0_146 = arith.constant 0 : index
    %85 = vector.load %arg1[%c9_144, %c0_145, %c0_146] : memref<10x1x128xf32, #tpu.memory_space<vmem>>, vector<1x1x128xf32>
    %86 = vector.shape_cast %85 : vector<1x1x128xf32> to vector<1x128xf32>
    %87 = vector.broadcast %50 : f32 to vector<1x128xf32>
    %88 = vector.broadcast %0 : f32 to vector<1x128xf32>
    %89 = arith.mulf %88, %68 : vector<1x128xf32>
    %90 = arith.addf %87, %89 : vector<1x128xf32>
    %91 = vector.broadcast %1 : f32 to vector<1x128xf32>
    %92 = arith.mulf %91, %70 : vector<1x128xf32>
    %93 = arith.addf %90, %92 : vector<1x128xf32>
    %94 = vector.broadcast %2 : f32 to vector<1x128xf32>
    %95 = arith.mulf %94, %72 : vector<1x128xf32>
    %96 = arith.addf %93, %95 : vector<1x128xf32>
    %97 = vector.broadcast %3 : f32 to vector<1x128xf32>
    %98 = arith.mulf %97, %74 : vector<1x128xf32>
    %99 = arith.addf %96, %98 : vector<1x128xf32>
    %100 = vector.broadcast %4 : f32 to vector<1x128xf32>
    %101 = arith.mulf %100, %76 : vector<1x128xf32>
    %102 = arith.addf %99, %101 : vector<1x128xf32>
    %103 = vector.broadcast %5 : f32 to vector<1x128xf32>
    %104 = arith.mulf %103, %78 : vector<1x128xf32>
    %105 = arith.addf %102, %104 : vector<1x128xf32>
    %106 = vector.broadcast %6 : f32 to vector<1x128xf32>
    %107 = arith.mulf %106, %80 : vector<1x128xf32>
    %108 = arith.addf %105, %107 : vector<1x128xf32>
    %109 = vector.broadcast %7 : f32 to vector<1x128xf32>
    %110 = arith.mulf %109, %82 : vector<1x128xf32>
    %111 = arith.addf %108, %110 : vector<1x128xf32>
    %112 = vector.broadcast %8 : f32 to vector<1x128xf32>
    %113 = arith.mulf %112, %84 : vector<1x128xf32>
    %114 = arith.addf %111, %113 : vector<1x128xf32>
    %115 = vector.broadcast %9 : f32 to vector<1x128xf32>
    %116 = arith.mulf %115, %86 : vector<1x128xf32>
    %117 = arith.addf %114, %116 : vector<1x128xf32>
    %cst = arith.constant 0.000000e+00 : f32
    %118 = vector.broadcast %cst : f32 to vector<1x128xf32>
    %119 = arith.maximumf %117, %118 : vector<1x128xf32>
    %120 = vector.broadcast %51 : f32 to vector<1x128xf32>
    %121 = vector.broadcast %10 : f32 to vector<1x128xf32>
    %122 = arith.mulf %121, %68 : vector<1x128xf32>
    %123 = arith.addf %120, %122 : vector<1x128xf32>
    %124 = vector.broadcast %11 : f32 to vector<1x128xf32>
    %125 = arith.mulf %124, %70 : vector<1x128xf32>
    %126 = arith.addf %123, %125 : vector<1x128xf32>
    %127 = vector.broadcast %12 : f32 to vector<1x128xf32>
    %128 = arith.mulf %127, %72 : vector<1x128xf32>
    %129 = arith.addf %126, %128 : vector<1x128xf32>
    %130 = vector.broadcast %13 : f32 to vector<1x128xf32>
    %131 = arith.mulf %130, %74 : vector<1x128xf32>
    %132 = arith.addf %129, %131 : vector<1x128xf32>
    %133 = vector.broadcast %14 : f32 to vector<1x128xf32>
    %134 = arith.mulf %133, %76 : vector<1x128xf32>
    %135 = arith.addf %132, %134 : vector<1x128xf32>
    %136 = vector.broadcast %15 : f32 to vector<1x128xf32>
    %137 = arith.mulf %136, %78 : vector<1x128xf32>
    %138 = arith.addf %135, %137 : vector<1x128xf32>
    %139 = vector.broadcast %16 : f32 to vector<1x128xf32>
    %140 = arith.mulf %139, %80 : vector<1x128xf32>
    %141 = arith.addf %138, %140 : vector<1x128xf32>
    %142 = vector.broadcast %17 : f32 to vector<1x128xf32>
    %143 = arith.mulf %142, %82 : vector<1x128xf32>
    %144 = arith.addf %141, %143 : vector<1x128xf32>
    %145 = vector.broadcast %18 : f32 to vector<1x128xf32>
    %146 = arith.mulf %145, %84 : vector<1x128xf32>
    %147 = arith.addf %144, %146 : vector<1x128xf32>
    %148 = vector.broadcast %19 : f32 to vector<1x128xf32>
    %149 = arith.mulf %148, %86 : vector<1x128xf32>
    %150 = arith.addf %147, %149 : vector<1x128xf32>
    %cst_147 = arith.constant 0.000000e+00 : f32
    %151 = vector.broadcast %cst_147 : f32 to vector<1x128xf32>
    %152 = arith.maximumf %150, %151 : vector<1x128xf32>
    %153 = vector.broadcast %52 : f32 to vector<1x128xf32>
    %154 = vector.broadcast %20 : f32 to vector<1x128xf32>
    %155 = arith.mulf %154, %68 : vector<1x128xf32>
    %156 = arith.addf %153, %155 : vector<1x128xf32>
    %157 = vector.broadcast %21 : f32 to vector<1x128xf32>
    %158 = arith.mulf %157, %70 : vector<1x128xf32>
    %159 = arith.addf %156, %158 : vector<1x128xf32>
    %160 = vector.broadcast %22 : f32 to vector<1x128xf32>
    %161 = arith.mulf %160, %72 : vector<1x128xf32>
    %162 = arith.addf %159, %161 : vector<1x128xf32>
    %163 = vector.broadcast %23 : f32 to vector<1x128xf32>
    %164 = arith.mulf %163, %74 : vector<1x128xf32>
    %165 = arith.addf %162, %164 : vector<1x128xf32>
    %166 = vector.broadcast %24 : f32 to vector<1x128xf32>
    %167 = arith.mulf %166, %76 : vector<1x128xf32>
    %168 = arith.addf %165, %167 : vector<1x128xf32>
    %169 = vector.broadcast %25 : f32 to vector<1x128xf32>
    %170 = arith.mulf %169, %78 : vector<1x128xf32>
    %171 = arith.addf %168, %170 : vector<1x128xf32>
    %172 = vector.broadcast %26 : f32 to vector<1x128xf32>
    %173 = arith.mulf %172, %80 : vector<1x128xf32>
    %174 = arith.addf %171, %173 : vector<1x128xf32>
    %175 = vector.broadcast %27 : f32 to vector<1x128xf32>
    %176 = arith.mulf %175, %82 : vector<1x128xf32>
    %177 = arith.addf %174, %176 : vector<1x128xf32>
    %178 = vector.broadcast %28 : f32 to vector<1x128xf32>
    %179 = arith.mulf %178, %84 : vector<1x128xf32>
    %180 = arith.addf %177, %179 : vector<1x128xf32>
    %181 = vector.broadcast %29 : f32 to vector<1x128xf32>
    %182 = arith.mulf %181, %86 : vector<1x128xf32>
    %183 = arith.addf %180, %182 : vector<1x128xf32>
    %cst_148 = arith.constant 0.000000e+00 : f32
    %184 = vector.broadcast %cst_148 : f32 to vector<1x128xf32>
    %185 = arith.maximumf %183, %184 : vector<1x128xf32>
    %186 = vector.broadcast %53 : f32 to vector<1x128xf32>
    %187 = vector.broadcast %30 : f32 to vector<1x128xf32>
    %188 = arith.mulf %187, %68 : vector<1x128xf32>
    %189 = arith.addf %186, %188 : vector<1x128xf32>
    %190 = vector.broadcast %31 : f32 to vector<1x128xf32>
    %191 = arith.mulf %190, %70 : vector<1x128xf32>
    %192 = arith.addf %189, %191 : vector<1x128xf32>
    %193 = vector.broadcast %32 : f32 to vector<1x128xf32>
    %194 = arith.mulf %193, %72 : vector<1x128xf32>
    %195 = arith.addf %192, %194 : vector<1x128xf32>
    %196 = vector.broadcast %33 : f32 to vector<1x128xf32>
    %197 = arith.mulf %196, %74 : vector<1x128xf32>
    %198 = arith.addf %195, %197 : vector<1x128xf32>
    %199 = vector.broadcast %34 : f32 to vector<1x128xf32>
    %200 = arith.mulf %199, %76 : vector<1x128xf32>
    %201 = arith.addf %198, %200 : vector<1x128xf32>
    %202 = vector.broadcast %35 : f32 to vector<1x128xf32>
    %203 = arith.mulf %202, %78 : vector<1x128xf32>
    %204 = arith.addf %201, %203 : vector<1x128xf32>
    %205 = vector.broadcast %36 : f32 to vector<1x128xf32>
    %206 = arith.mulf %205, %80 : vector<1x128xf32>
    %207 = arith.addf %204, %206 : vector<1x128xf32>
    %208 = vector.broadcast %37 : f32 to vector<1x128xf32>
    %209 = arith.mulf %208, %82 : vector<1x128xf32>
    %210 = arith.addf %207, %209 : vector<1x128xf32>
    %211 = vector.broadcast %38 : f32 to vector<1x128xf32>
    %212 = arith.mulf %211, %84 : vector<1x128xf32>
    %213 = arith.addf %210, %212 : vector<1x128xf32>
    %214 = vector.broadcast %39 : f32 to vector<1x128xf32>
    %215 = arith.mulf %214, %86 : vector<1x128xf32>
    %216 = arith.addf %213, %215 : vector<1x128xf32>
    %cst_149 = arith.constant 0.000000e+00 : f32
    %217 = vector.broadcast %cst_149 : f32 to vector<1x128xf32>
    %218 = arith.maximumf %216, %217 : vector<1x128xf32>
    %219 = vector.broadcast %54 : f32 to vector<1x128xf32>
    %220 = vector.broadcast %40 : f32 to vector<1x128xf32>
    %221 = arith.mulf %220, %68 : vector<1x128xf32>
    %222 = arith.addf %219, %221 : vector<1x128xf32>
    %223 = vector.broadcast %41 : f32 to vector<1x128xf32>
    %224 = arith.mulf %223, %70 : vector<1x128xf32>
    %225 = arith.addf %222, %224 : vector<1x128xf32>
    %226 = vector.broadcast %42 : f32 to vector<1x128xf32>
    %227 = arith.mulf %226, %72 : vector<1x128xf32>
    %228 = arith.addf %225, %227 : vector<1x128xf32>
    %229 = vector.broadcast %43 : f32 to vector<1x128xf32>
    %230 = arith.mulf %229, %74 : vector<1x128xf32>
    %231 = arith.addf %228, %230 : vector<1x128xf32>
    %232 = vector.broadcast %44 : f32 to vector<1x128xf32>
    %233 = arith.mulf %232, %76 : vector<1x128xf32>
    %234 = arith.addf %231, %233 : vector<1x128xf32>
    %235 = vector.broadcast %45 : f32 to vector<1x128xf32>
    %236 = arith.mulf %235, %78 : vector<1x128xf32>
    %237 = arith.addf %234, %236 : vector<1x128xf32>
    %238 = vector.broadcast %46 : f32 to vector<1x128xf32>
    %239 = arith.mulf %238, %80 : vector<1x128xf32>
    %240 = arith.addf %237, %239 : vector<1x128xf32>
    %241 = vector.broadcast %47 : f32 to vector<1x128xf32>
    %242 = arith.mulf %241, %82 : vector<1x128xf32>
    %243 = arith.addf %240, %242 : vector<1x128xf32>
    %244 = vector.broadcast %48 : f32 to vector<1x128xf32>
    %245 = arith.mulf %244, %84 : vector<1x128xf32>
    %246 = arith.addf %243, %245 : vector<1x128xf32>
    %247 = vector.broadcast %49 : f32 to vector<1x128xf32>
    %248 = arith.mulf %247, %86 : vector<1x128xf32>
    %249 = arith.addf %246, %248 : vector<1x128xf32>
    %cst_150 = arith.constant 0.000000e+00 : f32
    %250 = vector.broadcast %cst_150 : f32 to vector<1x128xf32>
    %251 = arith.maximumf %249, %250 : vector<1x128xf32>
    %252 = vector.broadcast %65 : f32 to vector<1x128xf32>
    %253 = vector.broadcast %55 : f32 to vector<1x128xf32>
    %254 = arith.mulf %253, %119 : vector<1x128xf32>
    %255 = arith.addf %252, %254 : vector<1x128xf32>
    %256 = vector.broadcast %56 : f32 to vector<1x128xf32>
    %257 = arith.mulf %256, %152 : vector<1x128xf32>
    %258 = arith.addf %255, %257 : vector<1x128xf32>
    %259 = vector.broadcast %57 : f32 to vector<1x128xf32>
    %260 = arith.mulf %259, %185 : vector<1x128xf32>
    %261 = arith.addf %258, %260 : vector<1x128xf32>
    %262 = vector.broadcast %58 : f32 to vector<1x128xf32>
    %263 = arith.mulf %262, %218 : vector<1x128xf32>
    %264 = arith.addf %261, %263 : vector<1x128xf32>
    %265 = vector.broadcast %59 : f32 to vector<1x128xf32>
    %266 = arith.mulf %265, %251 : vector<1x128xf32>
    %267 = arith.addf %264, %266 : vector<1x128xf32>
    %c0_151 = arith.constant 0 : index
    %c0_152 = arith.constant 0 : index
    %c0_153 = arith.constant 0 : index
    %268 = vector.load %arg6[%c0_151, %c0_152, %c0_153] : memref<2x1x128xf32, #tpu.memory_space<vmem>>, vector<1x1x128xf32>
    %269 = vector.shape_cast %268 : vector<1x1x128xf32> to vector<1x128xf32>
    %270 = vector.shape_cast %267 : vector<1x128xf32> to vector<1x1x128xf32>
    tpu.vector_store %arg6[%c0_151, %c0_152, %c0_153], %270 {strides = array<i32>} : memref<2x1x128xf32, #tpu.memory_space<vmem>>, vector<1x1x128xf32>,
    %271 = vector.broadcast %66 : f32 to vector<1x128xf32>
    %272 = vector.broadcast %60 : f32 to vector<1x128xf32>
    %273 = arith.mulf %272, %119 : vector<1x128xf32>
    %274 = arith.addf %271, %273 : vector<1x128xf32>
    %275 = vector.broadcast %61 : f32 to vector<1x128xf32>
    %276 = arith.mulf %275, %152 : vector<1x128xf32>
    %277 = arith.addf %274, %276 : vector<1x128xf32>
    %278 = vector.broadcast %62 : f32 to vector<1x128xf32>
    %279 = arith.mulf %278, %185 : vector<1x128xf32>
    %280 = arith.addf %277, %279 : vector<1x128xf32>
    %281 = vector.broadcast %63 : f32 to vector<1x128xf32>
    %282 = arith.mulf %281, %218 : vector<1x128xf32>
    %283 = arith.addf %280, %282 : vector<1x128xf32>
    %284 = vector.broadcast %64 : f32 to vector<1x128xf32>
    %285 = arith.mulf %284, %251 : vector<1x128xf32>
    %286 = arith.addf %283, %285 : vector<1x128xf32>
    %c1_154 = arith.constant 1 : index
    %c0_155 = arith.constant 0 : index
    %c0_156 = arith.constant 0 : index
    %287 = vector.load %arg6[%c1_154, %c0_155, %c0_156] : memref<2x1x128xf32, #tpu.memory_space<vmem>>, vector<1x1x128xf32>
    %288 = vector.shape_cast %287 : vector<1x1x128xf32> to vector<1x128xf32>
    %289 = vector.shape_cast %286 : vector<1x128xf32> to vector<1x1x128xf32>
    tpu.vector_store %arg6[%c1_154, %c0_155, %c0_156], %289 {strides = array<i32>} : memref<2x1x128xf32, #tpu.memory_space<vmem>>, vector<1x1x128xf32>,
    return
  }
  func.func @transform_0(%arg0: i32) -> (i32, i32, i32) {
    %c0_i32 = arith.constant 0 : i32
    %c0_i32_0 = arith.constant 0 : i32
    %c0_i32_1 = arith.constant 0 : i32
    return %c0_i32, %arg0, %c0_i32_0 : i32, i32, i32
  }
  func.func @transform_1(%arg0: i32) -> (i32, i32) {
    %c0_i32 = arith.constant 0 : i32
    %c0_i32_0 = arith.constant 0 : i32
    %c0_i32_1 = arith.constant 0 : i32
    return %c0_i32, %c0_i32_0 : i32, i32
  }
  func.func @transform_2(%arg0: i32) -> i32 {
    %c0_i32 = arith.constant 0 : i32
    %c0_i32_0 = arith.constant 0 : i32
    return %c0_i32 : i32
  }
  func.func @transform_3(%arg0: i32) -> (i32, i32) {
    %c0_i32 = arith.constant 0 : i32
    %c0_i32_0 = arith.constant 0 : i32
    %c0_i32_1 = arith.constant 0 : i32
    return %c0_i32, %c0_i32_0 : i32, i32
  }
  func.func @transform_4(%arg0: i32) -> i32 {
    %c0_i32 = arith.constant 0 : i32
    %c0_i32_0 = arith.constant 0 : i32
    return %c0_i32 : i32
  }
  func.func @transform_5(%arg0: i32) -> (i32, i32, i32) {
    %c0_i32 = arith.constant 0 : i32
    %c0_i32_0 = arith.constant 0 : i32
    %c0_i32_1 = arith.constant 0 : i32
    return %c0_i32, %arg0, %c0_i32_0 : i32, i32, i32
  }
}

</mosaic_0001>

<llo_original>
// kernel: simple_model_forward.1
$region0: #{simple_model_forward.1}
  #allocation0 [shape = 'u32[]', space=smem, size = 0x4, offset = 0x4, fixed_abs, tag = 'smem constant byte address 0x4 - core index']
  #allocation1 [shape = 'u32[144,128]{1,0:T(1,128)}', space=vmem, size = 0x12000, scoped, tag = 'internal scratch']
  %s0 = inlined_call_operand.vmem [shape: f32[10,1,128], index: 0, kind: input, shape index: {}]
  %s1 = inlined_call_operand.vmem [shape: f32[5,10], index: 1, kind: input, shape index: {}]
  %s2 = inlined_call_operand.vmem [shape: f32[5], index: 2, kind: input, shape index: {}]
  %s3 = inlined_call_operand.vmem [shape: f32[2,5], index: 3, kind: input, shape index: {}]
  %s4 = inlined_call_operand.vmem [shape: f32[2], index: 4, kind: input, shape index: {}]
  %s5 = inlined_call_operand.vmem [shape: f32[2,1,128], index: 5, kind: output, shape index: {}]
  %s6 = sld [smem:[#allocation0]]
  $region46: #{simple_model_forward.1} parent=0
    _
  %s8 = ssub.s32 1, %s6
  %s9 = scalar_select 0, %s8, %s6
  $region1: #{simple_model_forward.1} parent=0
    #allocation2 [shape = 'u8[4096]{0}', space=smem, size = 0x1000, scoped, tag = 'input window, operand 1, single buffered']
    #allocation3 [shape = 's32[1]{0}', space=sflag, size = 0x4, scoped, tag = 'scoped memory for simple_model_forward.1']
    #allocation4 [shape = 'u8[512]{0}', space=smem, size = 0x200, scoped, tag = 'input window, operand 2, single buffered']
    #allocation5 [shape = 's32[1]{0}', space=sflag, size = 0x4, scoped, tag = 'scoped memory for simple_model_forward.1']
    #allocation6 [shape = 'u8[1024]{0}', space=smem, size = 0x400, scoped, tag = 'input window, operand 3, single buffered']
    #allocation7 [shape = 'u8[512]{0}', space=smem, size = 0x200, scoped, tag = 'input window, operand 4, single buffered']
    #allocation8 [shape = 's32[1]{0}', space=sflag, size = 0x4, scoped, tag = 'scoped memory for simple_model_forward.1']
    %10 = vsyncpa [#allocation3], 0
    %11 = vsyncpa [#allocation5], 0
    %12 = vsyncpa [#allocation8], 0
    // Predicated region
    $region2: #{simple_model_forward.1} parent=1 // pred_check
      _
    $region3: #{simple_model_forward.1} parent=1 // pred_check_branch
      %14 = sbr.rel (0) target = $region5
    $region4: #{simple_model_forward.1} parent=1 // pred_region
      _
    $region5: #{simple_model_forward.1} parent=1 // pred_fallthru
      _
    // Predicated region
    $region6: #{simple_model_forward.1} parent=1 // pred_check
      _
    $region7: #{simple_model_forward.1} parent=1 // pred_check_branch
      %16 = sbr.rel (0) target = $region9
    $region8: #{simple_model_forward.1} parent=1 // pred_region
      %s18 = ssub.s32 128, 128
      %19 = vsyncadd [#allocation3], %s18
      %s21 = sshll.u32 %s1, 4
      %s22 = int_to_ptr.vmem [resolvable:$true] %s21
      %24 = dma.vmem_to_smem %s22, 128, [#allocation2], [#allocation3]
    $region9: #{simple_model_forward.1} parent=1 // pred_fallthru
      _
    // Predicated region
    $region10: #{simple_model_forward.1} parent=1 // pred_check
      _
    $region11: #{simple_model_forward.1} parent=1 // pred_check_branch
      %26 = sbr.rel (0) target = $region13
    $region12: #{simple_model_forward.1} parent=1 // pred_region
      %s28 = ssub.s32 16, 16
      %29 = vsyncadd [#allocation5], %s28
      %s31 = sshll.u32 %s2, 4
      %s32 = int_to_ptr.vmem [resolvable:$true] %s31
      %34 = dma.vmem_to_smem %s32, 16, [#allocation4], [#allocation5]
    $region13: #{simple_model_forward.1} parent=1 // pred_fallthru
      _
    // Predicated region
    $region14: #{simple_model_forward.1} parent=1 // pred_check
      _
    $region15: #{simple_model_forward.1} parent=1 // pred_check_branch
      %36 = sbr.rel (0) target = $region17
    $region16: #{simple_model_forward.1} parent=1 // pred_region
      %s38 = ssub.s32 32, 32
      %39 = vsyncadd [#allocation5], %s38
      %s41 = sshll.u32 %s3, 4
      %s42 = int_to_ptr.vmem [resolvable:$true] %s41
      %44 = dma.vmem_to_smem %s42, 32, [#allocation6], [#allocation5]
    $region17: #{simple_model_forward.1} parent=1 // pred_fallthru
      _
    // Predicated region
    $region18: #{simple_model_forward.1} parent=1 // pred_check
      _
    $region19: #{simple_model_forward.1} parent=1 // pred_check_branch
      %46 = sbr.rel (0) target = $region21
    $region20: #{simple_model_forward.1} parent=1 // pred_region
      %s48 = ssub.s32 16, 16
      %49 = vsyncadd [#allocation8], %s48
      %s51 = sshll.u32 %s4, 4
      %s52 = int_to_ptr.vmem [resolvable:$true] %s51
      %54 = dma.vmem_to_smem %s52, 16, [#allocation7], [#allocation8]
    $region21: #{simple_model_forward.1} parent=1 // pred_fallthru
      _
    // Predicated region
    $region22: #{simple_model_forward.1} parent=1 // pred_check
      _
    $region23: #{simple_model_forward.1} parent=1 // pred_check_branch
      %56 = sbr.rel (0) target = $region25
    $region24: #{simple_model_forward.1} parent=1 // pred_region
      %57 = dma.done [#allocation3], 128
    $region25: #{simple_model_forward.1} parent=1 // pred_fallthru
      _
    // Predicated region
    $region26: #{simple_model_forward.1} parent=1 // pred_check
      _
    $region27: #{simple_model_forward.1} parent=1 // pred_check_branch
      %59 = sbr.rel (0) target = $region29
    $region28: #{simple_model_forward.1} parent=1 // pred_region
      %60 = dma.done [#allocation5], 16
    $region29: #{simple_model_forward.1} parent=1 // pred_fallthru
      _
    // Predicated region
    $region30: #{simple_model_forward.1} parent=1 // pred_check
      _
    $region31: #{simple_model_forward.1} parent=1 // pred_check_branch
      %62 = sbr.rel (0) target = $region33
    $region32: #{simple_model_forward.1} parent=1 // pred_region
      %63 = dma.done [#allocation5], 32
    $region33: #{simple_model_forward.1} parent=1 // pred_fallthru
      _
    // Predicated region
    $region34: #{simple_model_forward.1} parent=1 // pred_check
      _
    $region35: #{simple_model_forward.1} parent=1 // pred_check_branch
      %65 = sbr.rel (0) target = $region37
    $region36: #{simple_model_forward.1} parent=1 // pred_region
      %66 = dma.done [#allocation8], 16
    $region37: #{simple_model_forward.1} parent=1 // pred_fallthru
      _
    %67 = sfence
    %s68 = sld [smem:[#allocation2]]
    %s69 = sld [smem:[#allocation2 + $0x1]]
    %s70 = sld [smem:[#allocation2 + $0x2]]
    %s71 = sld [smem:[#allocation2 + $0x3]]
    %s72 = sld [smem:[#allocation2 + $0x4]]
    %s73 = sld [smem:[#allocation2 + $0x5]]
    %s74 = sld [smem:[#allocation2 + $0x6]]
    %s75 = sld [smem:[#allocation2 + $0x7]]
    %s76 = sld [smem:[#allocation2 + $0x8]]
    %s77 = sld [smem:[#allocation2 + $0x9]]
    %s78 = sld [smem:[#allocation2 + $0x80]]
    %s79 = sld [smem:[#allocation2 + $0x81]]
    %s80 = sld [smem:[#allocation2 + $0x82]]
    %s81 = sld [smem:[#allocation2 + $0x83]]
    %s82 = sld [smem:[#allocation2 + $0x84]]
    %s83 = sld [smem:[#allocation2 + $0x85]]
    %s84 = sld [smem:[#allocation2 + $0x86]]
    %s85 = sld [smem:[#allocation2 + $0x87]]
    %s86 = sld [smem:[#allocation2 + $0x88]]
    %s87 = sld [smem:[#allocation2 + $0x89]]
    %s88 = sld [smem:[#allocation2 + $0x100]]
    %s89 = sld [smem:[#allocation2 + $0x101]]
    %s90 = sld [smem:[#allocation2 + $0x102]]
    %s91 = sld [smem:[#allocation2 + $0x103]]
    %s92 = sld [smem:[#allocation2 + $0x104]]
    %s93 = sld [smem:[#allocation2 + $0x105]]
    %s94 = sld [smem:[#allocation2 + $0x106]]
    %s95 = sld [smem:[#allocation2 + $0x107]]
    %s96 = sld [smem:[#allocation2 + $0x108]]
    %s97 = sld [smem:[#allocation2 + $0x109]]
    %s98 = sld [smem:[#allocation2 + $0x180]]
    %s99 = sld [smem:[#allocation2 + $0x181]]
    %s100 = sld [smem:[#allocation2 + $0x182]]
    %s101 = sld [smem:[#allocation2 + $0x183]]
    %s102 = sld [smem:[#allocation2 + $0x184]]
    %s103 = sld [smem:[#allocation2 + $0x185]]
    %s104 = sld [smem:[#allocation2 + $0x186]]
    %s105 = sld [smem:[#allocation2 + $0x187]]
    %s106 = sld [smem:[#allocation2 + $0x188]]
    %s107 = sld [smem:[#allocation2 + $0x189]]
    %s108 = sld [smem:[#allocation2 + $0x200]]
    %s109 = sld [smem:[#allocation2 + $0x201]]
    %s110 = sld [smem:[#allocation2 + $0x202]]
    %s111 = sld [smem:[#allocation2 + $0x203]]
    %s112 = sld [smem:[#allocation2 + $0x204]]
    %s113 = sld [smem:[#allocation2 + $0x205]]
    %s114 = sld [smem:[#allocation2 + $0x206]]
    %s115 = sld [smem:[#allocation2 + $0x207]]
    %s116 = sld [smem:[#allocation2 + $0x208]]
    %s117 = sld [smem:[#allocation2 + $0x209]]
    %s118 = sld [smem:[#allocation4]]
    %s119 = sld [smem:[#allocation4 + $0x1]]
    %s120 = sld [smem:[#allocation4 + $0x2]]
    %s121 = sld [smem:[#allocation4 + $0x3]]
    %s122 = sld [smem:[#allocation4 + $0x4]]
    %s123 = sld [smem:[#allocation6]]
    %s124 = sld [smem:[#allocation6 + $0x1]]
    %s125 = sld [smem:[#allocation6 + $0x2]]
    %s126 = sld [smem:[#allocation6 + $0x3]]
    %s127 = sld [smem:[#allocation6 + $0x4]]
    %s128 = sld [smem:[#allocation6 + $0x80]]
    %s129 = sld [smem:[#allocation6 + $0x81]]
    %s130 = sld [smem:[#allocation6 + $0x82]]
    %s131 = sld [smem:[#allocation6 + $0x83]]
    %s132 = sld [smem:[#allocation6 + $0x84]]
    %s133 = sld [smem:[#allocation7]]
    %s134 = sld [smem:[#allocation7 + $0x1]]
    %v135 = vld [vmem:[%s0] sm:$0x1]
    %s136 = scalar_lea.vmem %s0, 1
    %v137 = vld [vmem:[%s136] sm:$0x1]
    %s138 = scalar_lea.vmem %s0, 2
    %v139 = vld [vmem:[%s138] sm:$0x1]
    %s140 = scalar_lea.vmem %s0, 3
    %v141 = vld [vmem:[%s140] sm:$0x1]
    %s142 = scalar_lea.vmem %s0, 4
    %v143 = vld [vmem:[%s142] sm:$0x1]
    %s144 = scalar_lea.vmem %s0, 5
    %v145 = vld [vmem:[%s144] sm:$0x1]
    %s146 = scalar_lea.vmem %s0, 6
    %v147 = vld [vmem:[%s146] sm:$0x1]
    %s148 = scalar_lea.vmem %s0, 7
    %v149 = vld [vmem:[%s148] sm:$0x1]
    %s150 = scalar_lea.vmem %s0, 8
    %v151 = vld [vmem:[%s150] sm:$0x1]
    %s152 = scalar_lea.vmem %s0, 9
    %v153 = vld [vmem:[%s152] sm:$0x1]
    %v154 = vstv %s118
    %v155 = vstv %s68
    %v156 = vmul.f32 %v155, %v135
    %v157 = vadd.f32 %v154, %v156
    %v158 = vstv %s69
    %v159 = vmul.f32 %v158, %v137
    %v160 = vadd.f32 %v157, %v159
    %v161 = vstv %s70
    %v162 = vmul.f32 %v161, %v139
    %v163 = vadd.f32 %v160, %v162
    %v164 = vstv %s71
    %v165 = vmul.f32 %v164, %v141
    %v166 = vadd.f32 %v163, %v165
    %v167 = vstv %s72
    %v168 = vmul.f32 %v167, %v143
    %v169 = vadd.f32 %v166, %v168
    %v170 = vstv %s73
    %v171 = vmul.f32 %v170, %v145
    %v172 = vadd.f32 %v169, %v171
    %v173 = vstv %s74
    %v174 = vmul.f32 %v173, %v147
    %v175 = vadd.f32 %v172, %v174
    %v176 = vstv %s75
    %v177 = vmul.f32 %v176, %v149
    %v178 = vadd.f32 %v175, %v177
    %v179 = vstv %s76
    %v180 = vmul.f32 %v179, %v151
    %v181 = vadd.f32 %v178, %v180
    %v182 = vstv %s77
    %v183 = vmul.f32 %v182, %v153
    %v184 = vadd.f32 %v181, %v183
    %v185 = vmax.f32 %v184, 0.0
    %v186 = vstv %s119
    %v187 = vstv %s78
    %v188 = vmul.f32 %v187, %v135
    %v189 = vadd.f32 %v186, %v188
    %v190 = vstv %s79
    %v191 = vmul.f32 %v190, %v137
    %v192 = vadd.f32 %v189, %v191
    %v193 = vstv %s80
    %v194 = vmul.f32 %v193, %v139
    %v195 = vadd.f32 %v192, %v194
    %v196 = vstv %s81
    %v197 = vmul.f32 %v196, %v141
    %v198 = vadd.f32 %v195, %v197
    %v199 = vstv %s82
    %v200 = vmul.f32 %v199, %v143
    %v201 = vadd.f32 %v198, %v200
    %v202 = vstv %s83
    %v203 = vmul.f32 %v202, %v145
    %v204 = vadd.f32 %v201, %v203
    %v205 = vstv %s84
    %v206 = vmul.f32 %v205, %v147
    %v207 = vadd.f32 %v204, %v206
    %v208 = vstv %s85
    %v209 = vmul.f32 %v208, %v149
    %v210 = vadd.f32 %v207, %v209
    %v211 = vstv %s86
    %v212 = vmul.f32 %v211, %v151
    %v213 = vadd.f32 %v210, %v212
    %v214 = vstv %s87
    %v215 = vmul.f32 %v214, %v153
    %v216 = vadd.f32 %v213, %v215
    %v217 = vmax.f32 %v216, 0.0
    %v218 = vstv %s120
    %v219 = vstv %s88
    %v220 = vmul.f32 %v219, %v135
    %v221 = vadd.f32 %v218, %v220
    %v222 = vstv %s89
    %v223 = vmul.f32 %v222, %v137
    %v224 = vadd.f32 %v221, %v223
    %v225 = vstv %s90
    %v226 = vmul.f32 %v225, %v139
    %v227 = vadd.f32 %v224, %v226
    %v228 = vstv %s91
    %v229 = vmul.f32 %v228, %v141
    %v230 = vadd.f32 %v227, %v229
    %v231 = vstv %s92
    %v232 = vmul.f32 %v231, %v143
    %v233 = vadd.f32 %v230, %v232
    %v234 = vstv %s93
    %v235 = vmul.f32 %v234, %v145
    %v236 = vadd.f32 %v233, %v235
    %v237 = vstv %s94
    %v238 = vmul.f32 %v237, %v147
    %v239 = vadd.f32 %v236, %v238
    %v240 = vstv %s95
    %v241 = vmul.f32 %v240, %v149
    %v242 = vadd.f32 %v239, %v241
    %v243 = vstv %s96
    %v244 = vmul.f32 %v243, %v151
    %v245 = vadd.f32 %v242, %v244
    %v246 = vstv %s97
    %v247 = vmul.f32 %v246, %v153
    %v248 = vadd.f32 %v245, %v247
    %v249 = vmax.f32 %v248, 0.0
    %v250 = vstv %s121
    %v251 = vstv %s98
    %v252 = vmul.f32 %v251, %v135
    %v253 = vadd.f32 %v250, %v252
    %v254 = vstv %s99
    %v255 = vmul.f32 %v254, %v137
    %v256 = vadd.f32 %v253, %v255
    %v257 = vstv %s100
    %v258 = vmul.f32 %v257, %v139
    %v259 = vadd.f32 %v256, %v258
    %v260 = vstv %s101
    %v261 = vmul.f32 %v260, %v141
    %v262 = vadd.f32 %v259, %v261
    %v263 = vstv %s102
    %v264 = vmul.f32 %v263, %v143
    %v265 = vadd.f32 %v262, %v264
    %v266 = vstv %s103
    %v267 = vmul.f32 %v266, %v145
    %v268 = vadd.f32 %v265, %v267
    %v269 = vstv %s104
    %v270 = vmul.f32 %v269, %v147
    %v271 = vadd.f32 %v268, %v270
    %v272 = vstv %s105
    %v273 = vmul.f32 %v272, %v149
    %v274 = vadd.f32 %v271, %v273
    %v275 = vstv %s106
    %v276 = vmul.f32 %v275, %v151
    %v277 = vadd.f32 %v274, %v276
    %v278 = vstv %s107
    %v279 = vmul.f32 %v278, %v153
    %v280 = vadd.f32 %v277, %v279
    %v281 = vmax.f32 %v280, 0.0
    %v282 = vstv %s122
    %v283 = vstv %s108
    %v284 = vmul.f32 %v283, %v135
    %v285 = vadd.f32 %v282, %v284
    %v286 = vstv %s109
    %v287 = vmul.f32 %v286, %v137
    %v288 = vadd.f32 %v285, %v287
    %v289 = vstv %s110
    %v290 = vmul.f32 %v289, %v139
    %v291 = vadd.f32 %v288, %v290
    %v292 = vstv %s111
    %v293 = vmul.f32 %v292, %v141
    %v294 = vadd.f32 %v291, %v293
    %v295 = vstv %s112
    %v296 = vmul.f32 %v295, %v143
    %v297 = vadd.f32 %v294, %v296
    %v298 = vstv %s113
    %v299 = vmul.f32 %v298, %v145
    %v300 = vadd.f32 %v297, %v299
    %v301 = vstv %s114
    %v302 = vmul.f32 %v301, %v147
    %v303 = vadd.f32 %v300, %v302
    %v304 = vstv %s115
    %v305 = vmul.f32 %v304, %v149
    %v306 = vadd.f32 %v303, %v305
    %v307 = vstv %s116
    %v308 = vmul.f32 %v307, %v151
    %v309 = vadd.f32 %v306, %v308
    %v310 = vstv %s117
    %v311 = vmul.f32 %v310, %v153
    %v312 = vadd.f32 %v309, %v311
    %v313 = vmax.f32 %v312, 0.0
    %v314 = vstv %s133
    %v315 = vstv %s123
    %v316 = vmul.f32 %v315, %v185
    %v317 = vadd.f32 %v314, %v316
    %v318 = vstv %s124
    %v319 = vmul.f32 %v318, %v217
    %v320 = vadd.f32 %v317, %v319
    %v321 = vstv %s125
    %v322 = vmul.f32 %v321, %v249
    %v323 = vadd.f32 %v320, %v322
    %v324 = vstv %s126
    %v325 = vmul.f32 %v324, %v281
    %v326 = vadd.f32 %v323, %v325
    %v327 = vstv %s127
    %v328 = vmul.f32 %v327, %v313
    %v329 = vadd.f32 %v326, %v328
    %330 = vst [vmem:[%s5] sm:$0x1] %v329
    %v331 = vstv %s134
    %v332 = vstv %s128
    %v333 = vmul.f32 %v332, %v185
    %v334 = vadd.f32 %v331, %v333
    %v335 = vstv %s129
    %v336 = vmul.f32 %v335, %v217
    %v337 = vadd.f32 %v334, %v336
    %v338 = vstv %s130
    %v339 = vmul.f32 %v338, %v249
    %v340 = vadd.f32 %v337, %v339
    %v341 = vstv %s131
    %v342 = vmul.f32 %v341, %v281
    %v343 = vadd.f32 %v340, %v342
    %v344 = vstv %s132
    %v345 = vmul.f32 %v344, %v313
    %v346 = vadd.f32 %v343, %v345
    %s347 = scalar_lea.vmem %s5, 1
    %348 = vst [vmem:[%s347] sm:$0x1] %v346
    // Predicated region
    $region38: #{simple_model_forward.1} parent=1 // pred_check
      _
    $region39: #{simple_model_forward.1} parent=1 // pred_check_branch
      %350 = sbr.rel (0) target = $region41
    $region40: #{simple_model_forward.1} parent=1 // pred_region
      _
    $region41: #{simple_model_forward.1} parent=1 // pred_fallthru
      _
    // Predicated region
    $region42: #{simple_model_forward.1} parent=1 // pred_check
      _
    $region43: #{simple_model_forward.1} parent=1 // pred_check_branch
      %352 = sbr.rel (0) target = $region45
    $region44: #{simple_model_forward.1} parent=1 // pred_region
      _
    $region45: #{simple_model_forward.1} parent=1 // pred_fallthru
      _
    %353 = vsyncpa [#allocation3], 1
    %354 = vsyncpa [#allocation5], 1
    %355 = vsyncpa [#allocation8], 1

</llo_original>
